<compile_context>
chip_gen: v5e
topology: v5e:2x2
jax: 0.10.0
libtpu: 0.0.40
codegen_flags: <defaults>
</compile_context>

<pallas_src>
import math

import jax
import jax.numpy as jnp
import numpy as np
from jax.experimental import pallas as pl
from jax.experimental.pallas import tpu as pltpu


def _eca_kernel(w_ref, x_ref, o_ref):
    """w_ref: (k,) f32 in SMEM; x_ref/o_ref: (n_block, C, L) in VMEM."""
    x = x_ref[...]                       # input dtype, no full-block upcast
    nt, C, L = x.shape
    k = w_ref.shape[0]
    pad = (k - 1) // 2

    # --- AdaptiveAvgPool1d(1): mean over L, accumulated in f32 ------------
    y = jnp.sum(x, axis=-1, dtype=jnp.float32) * jnp.float32(1.0 / L)  # (nt,C)

    # --- Conv1d(1, 1, k, padding=pad, bias=False) over the channel axis ---
    # out[n, c] = sum_j w[j] * y[n, c + j - pad]   (zero padded)
    # k is a tiny static int -> unroll; each tap is a static roll plus a
    # boundary mask.  This all happens on the (nt, C) pooled vector, which is
    # negligible next to the (nt, C, L) data movement.
    c_idx = jax.lax.broadcasted_iota(jnp.int32, (nt, C), 1)
    y2 = jnp.zeros((nt, C), jnp.float32)
    for j in range(k):
        d = j - pad
        rolled = y if d == 0 else jnp.roll(y, shift=-d, axis=1)
        valid = (c_idx + d >= 0) & (c_idx + d < C)
        y2 = y2 + w_ref[j] * jnp.where(valid, rolled, 0.0)

    # --- HardSigmoid gate: relu6(y + 3) / 6 -------------------------------
    gate = jnp.clip((y2 + 3.0) * (1.0 / 6.0), 0.0, 1.0)

    # --- x * gate (broadcast over L), in the input dtype ------------------
    o_ref[...] = x * gate.astype(x.dtype)[:, :, None]


def efficient_channel_attention(x, w, *, n_block=None,
                                block_budget_bytes=2 << 20):
    """x: (N, C, L); w: (k,) conv weight (flattened from torch (1, 1, k))."""
    N, C, L = x.shape
    k = w.shape[0]
    itemsize = jnp.dtype(x.dtype).itemsize

    # Pick the batch-tile so one (n_block, C, L) block stays ~2 MiB: with
    # double-buffered input + output that is <= ~8 MiB of VMEM, comfortably
    # inside the scoped defaults on v5e/v6e/v7x while still amortizing the
    # ~0.35 us per-grid-step overhead.
    if n_block is None:
        per_sample = C * L * itemsize
        n_block = max(1, min(N, block_budget_bytes // max(per_sample, 1)))
    n_block = max(1, min(int(n_block), N))
    while N % n_block:                   # keep the grid exact
        n_block -= 1
    grid = (N // n_block,)

    # TODO(synk): for huge per-sample C*L slabs (won't fit VMEM even at
    # n_block=1), switch to a two-pass structure: L-tiled pooling pass with a
    # VMEM accumulator, then an L-tiled gated-multiply pass.

    cost = pl.CostEstimate(
        flops=2 * N * C * L + 2 * k * N * C,   # pool-sum + gated multiply
        transcendentals=0,
        bytes_accessed=2 * N * C * L * itemsize + k * 4,
    )

    return pl.pallas_call(
        _eca_kernel,
        out_shape=jax.ShapeDtypeStruct((N, C, L), x.dtype),
        grid=grid,
        in_specs=[
            # tiny conv weight -> SMEM (cheap scalar reads in the tap loop)
            pl.BlockSpec(memory_space=pltpu.MemorySpace.SMEM),
            # batch-tiled activation blocks, full (C, L) trailing dims
            pl.BlockSpec((n_block, C, L), lambda i: (i, 0, 0)),
        ],
        out_specs=pl.BlockSpec((n_block, C, L), lambda i: (i, 0, 0)),
        compiler_params=pltpu.CompilerParams(
            dimension_semantics=("parallel",)),
        cost_estimate=cost,
    )(w, x)


def _reference(x, w):
    """Pure-JAX reference matching the PyTorch forward."""
    k = w.shape[0]
    pad = (k - 1) // 2
    y = jnp.mean(x, axis=-1)                                    # (N, C)
    yp = jnp.pad(y, ((0, 0), (pad, pad)))                       # zero pad C
    y2 = sum(w[j] * yp[:, j:j + x.shape[1]] for j in range(k))  # channel conv
    gate = jnp.clip((y2 + 3.0) / 6.0, 0.0, 1.0)                 # hard sigmoid
    return x * gate[:, :, None]


if __name__ == "__main__":
    # Module hyperparameters (channels -> adaptive kernel size k).
    # L = 128 keeps the last block dim lane-dense (multiple of 128).
    N, C, L = 8, 16, 128
    gamma, b = 2, 1
    t = int(abs((math.log(C, 2) + b) / gamma))
    k = t if t % 2 else t + 1            # C=16 -> k=3, padding=1

    key = jax.random.PRNGKey(0)
    kx, kw = jax.random.split(key)
    x = jax.random.normal(kx, (N, C, L), dtype=jnp.float32)

    # Deterministic conv weight init matching torch Conv1d default
    # (uniform in [-1/sqrt(fan_in), 1/sqrt(fan_in)], fan_in = 1 * k).
    bound = 1.0 / math.sqrt(k)
    w = jax.random.uniform(kw, (k,), dtype=jnp.float32,
                           minval=-bound, maxval=bound)

    # n_block=2 -> grid=(4,): exercises the pipelined / megacore-parallel
    # path even at these small test shapes.
    out = jax.block_until_ready(efficient_channel_attention(x, w, n_block=2))

    ref = _reference(x, w)
    np.testing.assert_allclose(np.asarray(out), np.asarray(ref),
                               rtol=1e-5, atol=1e-5)
    print("KERNEL_OK")
</pallas_src>

<mosaic_0001>
module attributes {stable_mosaic.version = 11 : i64} {
  func.func @_eca_kernel(%arg0: i32, %arg1: memref<3xf32, #tpu.memory_space<smem>>, %arg2: memref<2x16x128xf32, #tpu.memory_space<vmem>>, %arg3: memref<2x16x128xf32, #tpu.memory_space<vmem>>) attributes {dimension_semantics = [#tpu.dimension_semantics<parallel>], iteration_bounds = array<i64: 4>, scalar_prefetch = 0 : i64, scratch_operands = 0 : i64, tpu.core_type = #tpu.core_type<tc>, window_params = [{transform_indices = @transform_0, window_bounds = array<i64: 3>}, {transform_indices = @transform_1, window_bounds = array<i64: 2, 16, 128>}, {transform_indices = @transform_2, window_bounds = array<i64: 2, 16, 128>}]} {
    %c0 = arith.constant 0 : index
    %c0_0 = arith.constant 0 : index
    %c0_1 = arith.constant 0 : index
    %0 = vector.load %arg2[%c0, %c0_0, %c0_1] : memref<2x16x128xf32, #tpu.memory_space<vmem>>, vector<2x16x128xf32>
    %cst = arith.constant dense<0.000000e+00> : vector<2x16xf32>
    %1 = vector.multi_reduction <add>, %0, %cst [2] : vector<2x16x128xf32> to vector<2x16xf32>
    %cst_2 = arith.constant 7.812500e-03 : f32
    %2 = vector.broadcast %cst_2 : f32 to vector<2x16xf32>
    %3 = arith.mulf %1, %2 : vector<2x16xf32>
    %4 = tpu.iota {dimensions = array<i32: 1>} : vector<2x16xi32>
    %cst_3 = arith.constant 0.000000e+00 : f32
    %5 = vector.broadcast %cst_3 : f32 to vector<2x16xf32>
    %6 = vector.extract_strided_slice %3 {offsets = [0, 15], sizes = [2, 1], strides = [1, 1]} : vector<2x16xf32> to vector<2x1xf32>
    %7 = vector.extract_strided_slice %3 {offsets = [0, 0], sizes = [2, 15], strides = [1, 1]} : vector<2x16xf32> to vector<2x15xf32>
    %8 = tpu.concatenate %6, %7 in 1 : vector<2x1xf32>, vector<2x15xf32> -> vector<2x16xf32>
    %c-1_i32 = arith.constant -1 : i32
    %9 = vector.broadcast %c-1_i32 : i32 to vector<2x16xi32>
    %10 = arith.addi %4, %9 : vector<2x16xi32>
    %c0_i32 = arith.constant 0 : i32
    %11 = vector.broadcast %c0_i32 : i32 to vector<2x16xi32>
    %12 = arith.cmpi sge, %10, %11 : vector<2x16xi32>
    %c-1_i32_4 = arith.constant -1 : i32
    %13 = vector.broadcast %c-1_i32_4 : i32 to vector<2x16xi32>
    %14 = arith.addi %4, %13 : vector<2x16xi32>
    %c16_i32 = arith.constant 16 : i32
    %15 = vector.broadcast %c16_i32 : i32 to vector<2x16xi32>
    %16 = arith.cmpi slt, %14, %15 : vector<2x16xi32>
    %17 = arith.andi %12, %16 : vector<2x16xi1>
    %c0_5 = arith.constant 0 : index
    %18 = memref.load %arg1[%c0_5] : memref<3xf32, #tpu.memory_space<smem>>
    %cst_6 = arith.constant 0.000000e+00 : f32
    %19 = vector.broadcast %cst_6 : f32 to vector<2x16xf32>
    %20 = arith.select %17, %8, %19 : vector<2x16xi1>, vector<2x16xf32>
    %21 = vector.broadcast %18 : f32 to vector<2x16xf32>
    %22 = arith.mulf %21, %20 : vector<2x16xf32>
    %23 = arith.addf %5, %22 : vector<2x16xf32>
    %c0_i32_7 = arith.constant 0 : i32
    %24 = vector.broadcast %c0_i32_7 : i32 to vector<2x16xi32>
    %25 = arith.addi %4, %24 : vector<2x16xi32>
    %c0_i32_8 = arith.constant 0 : i32
    %26 = vector.broadcast %c0_i32_8 : i32 to vector<2x16xi32>
    %27 = arith.cmpi sge, %25, %26 : vector<2x16xi32>
    %c0_i32_9 = arith.constant 0 : i32
    %28 = vector.broadcast %c0_i32_9 : i32 to vector<2x16xi32>
    %29 = arith.addi %4, %28 : vector<2x16xi32>
    %c16_i32_10 = arith.constant 16 : i32
    %30 = vector.broadcast %c16_i32_10 : i32 to vector<2x16xi32>
    %31 = arith.cmpi slt, %29, %30 : vector<2x16xi32>
    %32 = arith.andi %27, %31 : vector<2x16xi1>
    %c1 = arith.constant 1 : index
    %33 = memref.load %arg1[%c1] : memref<3xf32, #tpu.memory_space<smem>>
    %cst_11 = arith.constant 0.000000e+00 : f32
    %34 = vector.broadcast %cst_11 : f32 to vector<2x16xf32>
    %35 = arith.select %32, %3, %34 : vector<2x16xi1>, vector<2x16xf32>
    %36 = vector.broadcast %33 : f32 to vector<2x16xf32>
    %37 = arith.mulf %36, %35 : vector<2x16xf32>
    %38 = arith.addf %23, %37 : vector<2x16xf32>
    %39 = vector.extract_strided_slice %3 {offsets = [0, 1], sizes = [2, 15], strides = [1, 1]} : vector<2x16xf32> to vector<2x15xf32>
    %40 = vector.extract_strided_slice %3 {offsets = [0, 0], sizes = [2, 1], strides = [1, 1]} : vector<2x16xf32> to vector<2x1xf32>
    %41 = tpu.concatenate %39, %40 in 1 : vector<2x15xf32>, vector<2x1xf32> -> vector<2x16xf32>
    %c1_i32 = arith.constant 1 : i32
    %42 = vector.broadcast %c1_i32 : i32 to vector<2x16xi32>
    %43 = arith.addi %4, %42 : vector<2x16xi32>
    %c0_i32_12 = arith.constant 0 : i32
    %44 = vector.broadcast %c0_i32_12 : i32 to vector<2x16xi32>
    %45 = arith.cmpi sge, %43, %44 : vector<2x16xi32>
    %c1_i32_13 = arith.constant 1 : i32
    %46 = vector.broadcast %c1_i32_13 : i32 to vector<2x16xi32>
    %47 = arith.addi %4, %46 : vector<2x16xi32>
    %c16_i32_14 = arith.constant 16 : i32
    %48 = vector.broadcast %c16_i32_14 : i32 to vector<2x16xi32>
    %49 = arith.cmpi slt, %47, %48 : vector<2x16xi32>
    %50 = arith.andi %45, %49 : vector<2x16xi1>
    %c2 = arith.constant 2 : index
    %51 = memref.load %arg1[%c2] : memref<3xf32, #tpu.memory_space<smem>>
    %cst_15 = arith.constant 0.000000e+00 : f32
    %52 = vector.broadcast %cst_15 : f32 to vector<2x16xf32>
    %53 = arith.select %50, %41, %52 : vector<2x16xi1>, vector<2x16xf32>
    %54 = vector.broadcast %51 : f32 to vector<2x16xf32>
    %55 = arith.mulf %54, %53 : vector<2x16xf32>
    %56 = arith.addf %38, %55 : vector<2x16xf32>
    %cst_16 = arith.constant 3.000000e+00 : f32
    %57 = vector.broadcast %cst_16 : f32 to vector<2x16xf32>
    %58 = arith.addf %56, %57 : vector<2x16xf32>
    %cst_17 = arith.constant 0.166666672 : f32
    %59 = vector.broadcast %cst_17 : f32 to vector<2x16xf32>
    %60 = arith.mulf %58, %59 : vector<2x16xf32>
    %cst_18 = arith.constant 0.000000e+00 : f32
    %cst_19 = arith.constant 1.000000e+00 : f32
    %61 = vector.broadcast %cst_18 : f32 to vector<2x16xf32>
    %62 = arith.maximumf %61, %60 : vector<2x16xf32>
    %63 = vector.broadcast %cst_19 : f32 to vector<2x16xf32>
    %64 = arith.minimumf %63, %62 : vector<2x16xf32>
    %65 = vector.shape_cast %64 : vector<2x16xf32> to vector<2x16x1xf32>
    %66 = vector.broadcast %65 : vector<2x16x1xf32> to vector<2x16x128xf32>
    %67 = arith.mulf %0, %66 : vector<2x16x128xf32>
    %c0_20 = arith.constant 0 : index
    %c0_21 = arith.constant 0 : index
    %c0_22 = arith.constant 0 : index
    %68 = vector.load %arg3[%c0_20, %c0_21, %c0_22] : memref<2x16x128xf32, #tpu.memory_space<vmem>>, vector<2x16x128xf32>
    tpu.vector_store %arg3[%c0_20, %c0_21, %c0_22], %67 {strides = array<i32>} : memref<2x16x128xf32, #tpu.memory_space<vmem>>, vector<2x16x128xf32>,
    return
  }
  func.func @transform_0(%arg0: i32) -> i32 {
    %c0_i32 = arith.constant 0 : i32
    %c0_i32_0 = arith.constant 0 : i32
    return %c0_i32 : i32
  }
  func.func @transform_1(%arg0: i32) -> (i32, i32, i32) {
    %c0_i32 = arith.constant 0 : i32
    %c0_i32_0 = arith.constant 0 : i32
    %c0_i32_1 = arith.constant 0 : i32
    return %arg0, %c0_i32, %c0_i32_0 : i32, i32, i32
  }
  func.func @transform_2(%arg0: i32) -> (i32, i32, i32) {
    %c0_i32 = arith.constant 0 : i32
    %c0_i32_0 = arith.constant 0 : i32
    %c0_i32_1 = arith.constant 0 : i32
    return %arg0, %c0_i32, %c0_i32_0 : i32, i32, i32
  }
}

</mosaic_0001>

<llo_original>
// kernel: tpu_custom_call.1
$region0: #{tpu_custom_call.1}
  #allocation0 [shape = 'u32[]', space=smem, size = 0x4, offset = 0x4, fixed_abs, tag = 'smem constant byte address 0x4 - core index']
  #allocation1 [shape = 'u32[72,128]{1,0:T(1,128)}', space=vmem, size = 0x9000, scoped, tag = 'internal scratch']
  %s0 = inlined_call_operand.hbm [shape: f32[3], index: 0, kind: input, shape index: {}]
  %s1 = inlined_call_operand.hbm [shape: f32[8,16,128], index: 1, kind: input, shape index: {}]
  %s2 = inlined_call_operand.hbm [shape: f32[8,16,128], index: 2, kind: output, shape index: {}]
  %s3 = sld [smem:[#allocation0]]
  $region49: #{tpu_custom_call.1} parent=0
    _
  %s5 = ssub.s32 1, %s3
  %s6 = scalar_select 0, %s5, %s3
  $region1: #{tpu_custom_call.1} parent=0
    #allocation2 [shape = 'u8[512]{0}', space=smem, size = 0x200, scoped, tag = 'input window, operand 0, single buffered']
    #allocation3 [shape = 's32[2]{0}', space=sflag, size = 0x8, scoped, tag = 'scoped memory for tpu_custom_call.1']
    #allocation4 [shape = 's32[2]{0}', space=sflag, size = 0x8, scoped, tag = 'scoped memory for tpu_custom_call.1']
    #allocation5 [shape = 's32[2]{0}', space=sflag, size = 0x8, scoped, tag = 'scoped memory for tpu_custom_call.1']
    #allocation6 [shape = 'u8[32768]{0}', space=vmem, size = 0x8000, scoped, tag = 'input window, operand 1']
    #allocation7 [shape = 'u8[32768]{0}', space=vmem, size = 0x8000, scoped, tag = 'output window, operand 0']
    %7 = vsyncpa [#allocation5], 0
    %8 = vsyncpa [#allocation3], 0
    %s9 = scalar_lea.sflag [#allocation3], 1
    %10 = vsyncpa %s9, 0
    %11 = vsyncpa [#allocation4], 0
    %s12 = scalar_lea.sflag [#allocation4], 1
    %13 = vsyncpa %s12, 0
    loop: start=0, step=1, limit=6
    $region2: #{tpu_custom_call.1} parent=1 // loop_pre_header
      _
    $region3: #{tpu_custom_call.1} parent=1 // loop_header
      %s15 = sphi 0, %s19
      %p16 = scmp.ge.s32.totalorder %s15, 6
      %s23 = sphi 0, %s23
      %s25 = sphi 0, %s23
      %s26 = sphi 0, %s25
      %s40 = sphi 0, %s26
      %s46 = sphi 0, %s48
      %s49 = sphi 0, %s46
      %s50 = sphi 0, %s49
      %s66 = sphi 0, %s50
      %s72 = sphi 0, %s74
      %s75 = sphi 0, %s72
      %s76 = sphi 0, %s75
      %s92 = sphi 0, %s76
    $region4: #{tpu_custom_call.1} parent=1 // loop_header_branch
      %18 = sbr.rel (%p16) target = $region8
    $region5: #{tpu_custom_call.1} parent=1 // loop_body
      %s20 = ssub.s32 %s15, 1
      %s21 = ssub.s32 %s15, 2
      %s22 = sadd.s32 %s15, 1
      %s24 = sadd.s32 %s23, 1
      %p27 = scmp.eq.s32.totalorder %s15, 3
      %p28 = scmp.ne.s32.totalorder %s23, %s25
      %p29 = scmp.eq.s32.totalorder %s15, 0
      %p30 = por %p28, %p29
      %p31 = scmp.ne.s32.totalorder %s23, %s25
      %p32 = scmp.eq.s32.totalorder %s20, 3
      %p33 = por %p31, %p32
      %p34 = scmp.ne.s32.totalorder %s25, %s26
      %p35 = scmp.eq.s32.totalorder %s20, 0
      %p36 = por %p34, %p35
      %p37 = scmp.ne.s32.totalorder %s25, %s26
      %p38 = scmp.eq.s32.totalorder %s21, 3
      %p39 = por %p37, %p38
      %p41 = scmp.ne.s32.totalorder %s26, %s40
      %p42 = scmp.eq.s32.totalorder %s21, 0
      %p43 = por %p41, %p42
      %s44 = ssub.s32 %s15, %s22
      %p45 = scmp.eq.s32.totalorder %s44, 0
      %s47 = sadd.s32 %s46, 1
      %s48 = scalar_select %p45, %s46, %s47
      %p51 = pneg %p45
      %p52 = scmp.eq.s32.totalorder %s15, 3
      %p53 = por %p51, %p52
      %p54 = scmp.ne.s32.totalorder %s46, %s49
      %p55 = scmp.eq.s32.totalorder %s15, 0
      %p56 = por %p54, %p55
      %p57 = scmp.ne.s32.totalorder %s46, %s49
      %p58 = scmp.eq.s32.totalorder %s20, 3
      %p59 = por %p57, %p58
      %p60 = scmp.ne.s32.totalorder %s49, %s50
      %p61 = scmp.eq.s32.totalorder %s20, 0
      %p62 = por %p60, %p61
      %p63 = scmp.ne.s32.totalorder %s49, %s50
      %p64 = scmp.eq.s32.totalorder %s21, 3
      %p65 = por %p63, %p64
      %p67 = scmp.ne.s32.totalorder %s50, %s66
      %p68 = scmp.eq.s32.totalorder %s21, 0
      %p69 = por %p67, %p68
      %s70 = ssub.s32 %s15, %s22
      %p71 = scmp.eq.s32.totalorder %s70, 0
      %s73 = sadd.s32 %s72, 1
      %s74 = scalar_select %p71, %s72, %s73
      %p77 = pneg %p71
      %p78 = scmp.eq.s32.totalorder %s15, 3
      %p79 = por %p77, %p78
      %p80 = scmp.ne.s32.totalorder %s72, %s75
      %p81 = scmp.eq.s32.totalorder %s15, 0
      %p82 = por %p80, %p81
      %p83 = scmp.ne.s32.totalorder %s72, %s75
      %p84 = scmp.eq.s32.totalorder %s20, 3
      %p85 = por %p83, %p84
      %p86 = scmp.ne.s32.totalorder %s75, %s76
      %p87 = scmp.eq.s32.totalorder %s20, 0
      %p88 = por %p86, %p87
      %p89 = scmp.ne.s32.totalorder %s75, %s76
      %p90 = scmp.eq.s32.totalorder %s21, 3
      %p91 = por %p89, %p90
      %p93 = scmp.ne.s32.totalorder %s76, %s92
      %p94 = scmp.eq.s32.totalorder %s21, 0
      %p95 = por %p93, %p94
      %p96 = scmp.le.s32.totalorder 1, %s15
      %p97 = scmp.lt.s32.totalorder %s15, 5
      %p98 = pnand %p96, %p97
      %p99 = pneg %p98
      // Predicated region
      $region9: #{tpu_custom_call.1} parent=5 // pred_check
        _
      $region10: #{tpu_custom_call.1} parent=5 // pred_check_branch
        %101 = sbr.rel (%p98) target = $region12
      $region11: #{tpu_custom_call.1} parent=5 // pred_region
        %s102 = ssub.s32 %s15, 1
        // Predicated region
        $region13: #{tpu_custom_call.1} parent=11 // pred_check
          %p103 = pneg %p36
        $region14: #{tpu_custom_call.1} parent=11 // pred_check_branch
          %105 = sbr.rel (%p103) target = $region16
        $region15: #{tpu_custom_call.1} parent=11 // pred_region
          %107 = vsyncadd [#allocation5], 0
          %s109 = sshll.u32 %s0, 4
          %s110 = int_to_ptr.hbm [resolvable:$true] %s109
          %112 = dma.hbm_to_smem %s110, 16, [#allocation2], [#allocation5]
        $region16: #{tpu_custom_call.1} parent=11 // pred_fallthru
          _
      $region12: #{tpu_custom_call.1} parent=5 // pred_fallthru
        _
      %p113 = scmp.lt.s32.totalorder %s15, 4
      // Predicated region
      $region17: #{tpu_custom_call.1} parent=5 // pred_check
        %p114 = pneg %p113
      $region18: #{tpu_custom_call.1} parent=5 // pred_check_branch
        %116 = sbr.rel (%p114) target = $region20
      $region19: #{tpu_custom_call.1} parent=5 // pred_region
        // Predicated region
        $region21: #{tpu_custom_call.1} parent=19 // pred_check
          %p117 = pneg %p56
        $region22: #{tpu_custom_call.1} parent=19 // pred_check_branch
          %119 = sbr.rel (%p117) target = $region24
        $region23: #{tpu_custom_call.1} parent=19 // pred_region
          %s120 = sand.u32 %s46, 1
          %s121 = scalar_lea.sflag [#allocation3], %s120
          %s122 = sand.u32 %s46, 1
          %s123 = smul.addr %s122, 32
          %s124 = scalar_lea.vmem [#allocation6], %s123
          %s125 = smul.u32 2, %s15
          %127 = vsyncadd %s121, 0
          %s128 = smul.addr %s125, 2
          %s129 = smul.addr %s128, 8
          %s130 = scalar_lea.hbm %s1, %s129
          %s131 = sshll.u32 %s130, 4
          %s132 = int_to_ptr.hbm [resolvable:$true] %s131
          %s133 = sshll.u32 %s124, 4
          %s134 = int_to_ptr.vmem [resolvable:$true] %s133
          %139 = dma.hbm_to_vmem [thread:$0]  %s132, 512, %s134, %s121, 128, 128, 8
        $region24: #{tpu_custom_call.1} parent=19 // pred_fallthru
          _
      $region20: #{tpu_custom_call.1} parent=5 // pred_fallthru
        _
      %p140 = scmp.le.s32.totalorder 1, %s15
      %p141 = scmp.lt.s32.totalorder %s15, 5
      %p142 = pnand %p140, %p141
      %p143 = pneg %p142
      // Predicated region
      $region25: #{tpu_custom_call.1} parent=5 // pred_check
        _
      $region26: #{tpu_custom_call.1} parent=5 // pred_check_branch
        %145 = sbr.rel (%p142) target = $region28
      $region27: #{tpu_custom_call.1} parent=5 // pred_region
        %s146 = ssub.s32 %s15, 1
        // Predicated region
        $region29: #{tpu_custom_call.1} parent=27 // pred_check
          %p147 = pneg %p36
        $region30: #{tpu_custom_call.1} parent=27 // pred_check_branch
          %149 = sbr.rel (%p147) target = $region32
        $region31: #{tpu_custom_call.1} parent=27 // pred_region
          %151 = dma.done [#allocation5], 16
        $region32: #{tpu_custom_call.1} parent=27 // pred_fallthru
          _
        %s152 = sand.u32 %s49, 1
        %s153 = scalar_lea.sflag [#allocation3], %s152
        %s154 = sand.u32 %s49, 1
        %s155 = smul.addr %s154, 32
        %s156 = scalar_lea.vmem [#allocation6], %s155
        // Predicated region
        $region33: #{tpu_custom_call.1} parent=27 // pred_check
          %p157 = pneg %p62
        $region34: #{tpu_custom_call.1} parent=27 // pred_check_branch
          %159 = sbr.rel (%p157) target = $region36
        $region35: #{tpu_custom_call.1} parent=27 // pred_region
          %161 = dma.done %s153, 512
        $region36: #{tpu_custom_call.1} parent=27 // pred_fallthru
          _
        %162 = sfence
        %p163 = pneg %p36
        %p164 = pneg %p33
        %s165 = sand.u32 %s49, 1
        %s166 = scalar_lea.sflag [#allocation3], %s165
        %s167 = sand.u32 %s49, 1
        %s168 = smul.addr %s167, 32
        %s169 = scalar_lea.vmem [#allocation6], %s168
        %p170 = pneg %p62
        %p171 = pneg %p59
        %p172 = pneg %p88
        %p173 = pneg %p85
        %s174 = sand.u32 %s75, 1
        %s175 = scalar_lea.sflag [#allocation4], %s174
        %s176 = sand.u32 %s75, 1
        %s177 = smul.addr %s176, 32
        %s178 = scalar_lea.vmem [#allocation7], %s177
        %s179 = smul.u32 2, %s20
        %s180 = smul.u32 2, %s20
        %v181 = vld [vmem:[%s156] sm:$0xff]
        %v182 = vld [vmem:[%s156 + $0x8] sm:$0xff]
        %v183 = vld [vmem:[%s156 + $0x10] sm:$0xff]
        %v184 = vld [vmem:[%s156 + $0x18] sm:$0xff]
        %185 = vadd.xlane.f32.xlu0 %v181
        %v186 = vpop.xlane.xlu0 %185
        %187 = vadd.xlane.f32.xlu0 %v182
        %v188 = vpop.xlane.xlu0 %187
        %189 = vadd.xlane.f32.xlu0 %v183
        %v190 = vpop.xlane.xlu0 %189
        %191 = vadd.xlane.f32.xlu0 %v184
        %v192 = vpop.xlane.xlu0 %191
        %v193 = vmul.f32 %v186, 0.0078125
        %v194 = vmul.f32 %v188, 0.0078125
        %v195 = vmul.f32 %v190, 0.0078125
        %v196 = vmul.f32 %v192, 0.0078125
        %v197 = vlaneseq
        %v198 = vand.u32 %v197, 127
        %v201 = vrot.slane %v196, 7
        %v206 = vadd.s32 %v198, 4294967295
        %v207 = vperm.slane %v193, %v206
        %v208 = vadd.s32 %v198, 4294967287
        %v209 = vperm.slane %v194, %v208
        %vm210 = vcmask 138312
        %v211 = vsel %vm210, %v209, %v207
        %v212 = vperm.slane %v195, %v206
        %v213 = vperm.slane %v196, %v208
        %v214 = vsel %vm210, %v213, %v212
        %vm217 = vcmask 7168
        %v218 = vsel %vm217, %v194, %v211
        %v219 = vsel %vm217, %v201, %v214
        %vm220 = vcmp.ge.s32.totalorder %v206, 0
        %vm221 = vcmp.lt.s32.totalorder %v206, 16
        %vm222 = vmand %vm220, %vm221
        %s223 = sld [smem:[#allocation2]]
        %v224 = vsel %vm222, %v218, 0.0
        %v225 = vsel %vm222, %v219, 0.0
        %v226 = vstv %s223
        %v227 = vmul.f32 %v226, %v224
        %v228 = vmul.f32 %v226, %v225
        %v229 = vadd.f32 %v227, 0.0
        %v230 = vadd.f32 %v228, 0.0
        %vm231 = vcmp.ge.s32.totalorder %v198, 0
        %vm232 = vcmp.lt.s32.totalorder %v198, 16
        %vm233 = vmand %vm231, %vm232
        %s234 = sld [smem:[#allocation2 + $0x1]]
        %v235 = vperm.slane %v193, %v198
        %v236 = vadd.s32 %v198, 4294967288
        %v237 = vperm.slane %v194, %v236
        %vm238 = vcmask 130112
        %v239 = vsel %vm238, %v237, %v235
        %v240 = vperm.slane %v195, %v198
        %v241 = vperm.slane %v196, %v236
        %v242 = vsel %vm238, %v241, %v240
        %vm243 = vcmask 1041409
        %v244 = vsel %vm243, %v242, %v239
        %v246 = vsel %vm233, %v244, 0.0
        %v247 = vstv %s234
        %v248 = vmul.f32 %v247, %v246
        %v250 = vrot.slane %v248, 1
        %v252 = vadd.f32 %v229, %v250
        %v253 = vadd.f32 %v230, %v250
        %v254 = vadd.s32 %v198, 1
        %v255 = vperm.slane %v193, %v254
        %v256 = vadd.s32 %v198, 4294967289
        %v257 = vperm.slane %v194, %v256
        %vm258 = vcmask 121912
        %v259 = vsel %vm258, %v257, %v255
        %v260 = vperm.slane %v195, %v254
        %v261 = vperm.slane %v196, %v256
        %v262 = vsel %vm258, %v261, %v260
        %vm263 = vcmask 1042434
        %v264 = vsel %vm263, %v262, %v259
        %v266 = vrot.slane %v193, 7
        %v267 = vrot.slane %v195, 6
        %v268 = vsel %vm263, %v267, %v266
        %vm270 = vcmask 121856
        %v271 = vsel %vm270, %v264, %v268
        %vm272 = vcmp.ge.s32.totalorder %v254, 0
        %vm273 = vcmp.lt.s32.totalorder %v254, 16
        %vm274 = vmand %vm272, %vm273
        %s275 = sld [smem:[#allocation2 + $0x2]]
        %v276 = vsel %vm274, %v271, 0.0
        %v277 = vstv %s275
        %v278 = vmul.f32 %v277, %v276
        %v280 = vrot.slane %v278, 2
        %v282 = vadd.f32 %v252, %v280
        %v283 = vadd.f32 %v253, %v280
        %v284 = vadd.f32 %v282, 3.0
        %v285 = vadd.f32 %v283, 3.0
        %v286 = vmul.f32 %v284, 0.16666667
        %v287 = vmul.f32 %v285, 0.16666667
        %v288 = vmax.f32 %v286, 0.0
        %v289 = vmax.f32 %v287, 0.0
        %v290 = vmin.f32 %v288, 1.0
        %v291 = vmin.f32 %v289, 1.0
        %v292 = vperm.slane %v290, 7
        %v293 = vlaneseq
        %v294 = vshrl.u32 %v293, 7
        %296 = vset.pattern.permute.xlu0 %v294
        %297 = vperm.xlu0 %296, %v292
        %v298 = vpop.permute.xlu0 %297
        %v299 = vlaneseq
        %v300 = vshrl.u32 %v299, 7
        %v301 = vadd.s32 %v300, 8
        %302 = vset.pattern.permute.xlu0 %v301
        %303 = vperm.xlu0 %302, %v292
        %v304 = vpop.permute.xlu0 %303
        %v305 = vperm.slane %v291, 0
        %v306 = vlaneseq
        %v307 = vshrl.u32 %v306, 7
        %309 = vset.pattern.permute.xlu0 %v307
        %310 = vperm.xlu0 %309, %v305
        %v311 = vpop.permute.xlu0 %310
        %v312 = vlaneseq
        %v313 = vshrl.u32 %v312, 7
        %v314 = vadd.s32 %v313, 8
        %315 = vset.pattern.permute.xlu0 %v314
        %316 = vperm.xlu0 %315, %v305
        %v317 = vpop.permute.xlu0 %316
        %v318 = vmul.f32 %v181, %v298
        %v319 = vmul.f32 %v182, %v304
        %v320 = vmul.f32 %v183, %v311
        %v321 = vmul.f32 %v184, %v317
        %322 = vst [vmem:[%s178] sm:$0xff] %v318
        %323 = vst [vmem:[%s178 + $0x8] sm:$0xff] %v319
        %324 = vst [vmem:[%s178 + $0x10] sm:$0xff] %v320
        %325 = vst [vmem:[%s178 + $0x18] sm:$0xff] %v321
        %s326 = sand.u32 %s75, 1
        %s327 = scalar_lea.sflag [#allocation4], %s326
        %s328 = sand.u32 %s75, 1
        %s329 = smul.addr %s328, 32
        %s330 = scalar_lea.vmem [#allocation7], %s329
        // Predicated region
        $region37: #{tpu_custom_call.1} parent=27 // pred_check
          %p331 = pneg %p85
        $region38: #{tpu_custom_call.1} parent=27 // pred_check_branch
          %333 = sbr.rel (%p331) target = $region40
        $region39: #{tpu_custom_call.1} parent=27 // pred_region
          %s334 = smul.u32 2, %s20
          %336 = vsyncadd %s327, 0
          %s337 = smul.addr %s334, 2
          %s338 = smul.addr %s337, 8
          %s339 = scalar_lea.hbm %s2, %s338
          %s340 = sshll.u32 %s330, 4
          %s341 = int_to_ptr.vmem [resolvable:$true] %s340
          %s342 = sshll.u32 %s339, 4
          %s343 = int_to_ptr.hbm [resolvable:$true] %s342
          %348 = dma.vmem_to_hbm [thread:$0]  %s341, 512, %s343, %s327, 128, 128, 8
        $region40: #{tpu_custom_call.1} parent=27 // pred_fallthru
          _
      $region28: #{tpu_custom_call.1} parent=5 // pred_fallthru
        _
      %p349 = scmp.le.s32.totalorder 2, %s15
      // Predicated region
      $region41: #{tpu_custom_call.1} parent=5 // pred_check
        %p350 = pneg %p349
      $region42: #{tpu_custom_call.1} parent=5 // pred_check_branch
        %352 = sbr.rel (%p350) target = $region44
      $region43: #{tpu_custom_call.1} parent=5 // pred_region
        %s353 = ssub.s32 %s15, 2
        // Predicated region
        $region45: #{tpu_custom_call.1} parent=43 // pred_check
          %p354 = pneg %p91
        $region46: #{tpu_custom_call.1} parent=43 // pred_check_branch
          %356 = sbr.rel (%p354) target = $region48
        $region47: #{tpu_custom_call.1} parent=43 // pred_region
          %s357 = sand.u32 %s76, 1
          %s358 = scalar_lea.sflag [#allocation4], %s357
          %s359 = sand.u32 %s76, 1
          %s360 = smul.addr %s359, 32
          %s361 = scalar_lea.vmem [#allocation7], %s360
          %363 = dma.done %s358, 512
        $region48: #{tpu_custom_call.1} parent=43 // pred_fallthru
          _
      $region44: #{tpu_custom_call.1} parent=5 // pred_fallthru
        _
    $region6: #{tpu_custom_call.1} parent=1 // loop_footer
      %s19 = sadd.s32 1, %s15
    $region7: #{tpu_custom_call.1} parent=1 // loop_footer_branch
      %14 = sbr.rel target = $region3
    $region8: #{tpu_custom_call.1} parent=1 // loop_exit
      _
    %364 = vsyncpa [#allocation3], 1
    %s365 = scalar_lea.sflag [#allocation3], 1
    %366 = vsyncpa %s365, 1
    %367 = vsyncpa [#allocation4], 1
    %s368 = scalar_lea.sflag [#allocation4], 1
    %369 = vsyncpa %s368, 1
    %370 = vsyncpa [#allocation5], 1
    %s371 = scalar_lea.sflag [#allocation5], 1
    %372 = vsyncpa %s371, 1

</llo_original>
